<compile_context>
chip_gen: v5e
topology: v5e:2x2
jax: 0.10.0
libtpu: 0.0.40
codegen_flags: <defaults>
</compile_context>

<pallas_src>
import functools

import jax
import jax.numpy as jnp
from jax.experimental import pallas as pl
from jax.experimental.pallas import tpu as pltpu


def _feedforward_kernel(x_ref, w1_ref, b1_ref, w2_ref, b2_ref, o_ref):
    """Fused 2-layer MLP over one lane-dense row-tile of the folded input."""
    x = x_ref[...].astype(w1_ref.dtype)                       # (TM, DIf) -> bf16
    h = jnp.dot(x, w1_ref[...],
                preferred_element_type=jnp.float32)           # (TM, Hf)  -- MXU
    h = jnp.maximum(h + b1_ref[...], 0.0)                     # bias + ReLU in f32
    y = jnp.dot(h.astype(w2_ref.dtype), w2_ref[...],
                preferred_element_type=jnp.float32)           # (TM, DOf) -- MXU
    y = jnp.maximum(y + b2_ref[...], 0.0)
    # dropout(p=0) in eval mode is identity -> nothing to do.
    o_ref[...] = y.astype(o_ref.dtype)


def _round_up(a, b):
    return ((a + b - 1) // b) * b


@functools.partial(jax.jit, static_argnames=("tile_m", "compute_dtype"))
def feedforward_projector(x, w1, b1, w2, b2, *, tile_m=1024,
                          compute_dtype=jnp.bfloat16):
    """Apply the 2-layer feedforward projector to the last dim of x.

    x : (..., D_in) float32
    w1: (D_in, H), b1: (H,), w2: (H, D_out), b2: (D_out,)   (torch weights transposed)
    returns (..., D_out) float32

    tile_m is measured in *folded* rows (each folded row packs `fold` original
    rows into the 128-lane dimension).
    """
    d_in = x.shape[-1]
    hidden = w1.shape[1]
    d_out = w2.shape[1]
    lead = x.shape[:-1]
    n = 1
    for s in lead:
        n *= s

    # Lane-density fold: pack `fold` consecutive rows into the lane dimension
    # so loads/stores use full 128-lane vregs.  Weights become block-diagonal.
    fold = 1
    for f in (4, 2):
        if (d_in * f) % 128 == 0 and (d_out * f) % 128 == 0 and (hidden * f) % 128 == 0:
            fold = f
            break
    di_f, h_f, do_f = d_in * fold, hidden * fold, d_out * fold

    # Grid / tile sizing (cdiv + zero-pad; no divisibility assert).
    n_fold = pl.cdiv(n, fold)
    tm = min(tile_m, max(8, _round_up(n_fold, 8)))
    tm = _round_up(tm, 8)
    if n_fold > 16 and pl.cdiv(n_fold, tm) == 1:
        # Keep >=2 parallel grid steps when there is enough work (v7x: 2 TCs).
        tm = max(8, _round_up(pl.cdiv(n_fold, 2), 8))
    grid_m = pl.cdiv(n_fold, tm)
    n_fold_pad = grid_m * tm
    n_pad = n_fold_pad * fold

    x2d = x.reshape(n, d_in)
    if n_pad != n:
        x2d = jnp.pad(x2d, ((0, n_pad - n), (0, 0)))
    xf = x2d.reshape(n_fold_pad, di_f)            # lane-dense folded input

    if fold > 1:
        eye = jnp.eye(fold, dtype=w1.dtype)
        w1_k = jnp.kron(eye, w1).astype(compute_dtype)              # (di_f, h_f)
        w2_k = jnp.kron(eye, w2).astype(compute_dtype)              # (h_f, do_f)
        b1_k = jnp.tile(b1, fold).reshape(1, h_f).astype(jnp.float32)
        b2_k = jnp.tile(b2, fold).reshape(1, do_f).astype(jnp.float32)
    else:
        w1_k = w1.astype(compute_dtype)
        w2_k = w2.astype(compute_dtype)
        b1_k = b1.reshape(1, h_f).astype(jnp.float32)
        b2_k = b2.reshape(1, do_f).astype(jnp.float32)

    flops = 2 * n_fold_pad * (di_f * h_f + h_f * do_f)
    bytes_accessed = (xf.size * xf.dtype.itemsize
                      + n_fold_pad * do_f * x.dtype.itemsize
                      + w1_k.size * w1_k.dtype.itemsize
                      + w2_k.size * w2_k.dtype.itemsize
                      + (b1_k.size + b2_k.size) * 4)

    out_f = pl.pallas_call(
        _feedforward_kernel,
        out_shape=jax.ShapeDtypeStruct((n_fold_pad, do_f), x.dtype),
        grid_spec=pltpu.PrefetchScalarGridSpec(
            num_scalar_prefetch=0,
            grid=(grid_m,),
            in_specs=[
                pl.BlockSpec((tm, di_f), lambda i: (i, 0)),     # x row tile (lane-dense)
                pl.BlockSpec((di_f, h_f), lambda i: (0, 0)),    # W1 block-diag (full)
                pl.BlockSpec((1, h_f), lambda i: (0, 0)),       # b1 (tiled)
                pl.BlockSpec((h_f, do_f), lambda i: (0, 0)),    # W2 block-diag (full)
                pl.BlockSpec((1, do_f), lambda i: (0, 0)),      # b2 (tiled)
            ],
            out_specs=pl.BlockSpec((tm, do_f), lambda i: (i, 0)),
        ),
        compiler_params=pltpu.CompilerParams(
            dimension_semantics=("parallel",)),
        cost_estimate=pl.CostEstimate(
            flops=flops, transcendentals=0, bytes_accessed=bytes_accessed),
    )(xf, w1_k, b1_k, w2_k, b2_k)

    out2d = out_f.reshape(n_pad, d_out)[:n]
    return out2d.reshape(*lead, d_out)


def _reference_f32(x, w1, b1, w2, b2):
    h = jnp.maximum(jnp.dot(x, w1) + b1, 0.0)
    return jnp.maximum(jnp.dot(h, w2) + b2, 0.0)


def _reference_mixed(x, w1, b1, w2, b2, compute_dtype=jnp.bfloat16):
    xc = x.astype(compute_dtype)
    h = jnp.dot(xc, w1.astype(compute_dtype),
                preferred_element_type=jnp.float32)
    h = jnp.maximum(h + b1, 0.0)
    y = jnp.dot(h.astype(compute_dtype), w2.astype(compute_dtype),
                preferred_element_type=jnp.float32)
    return jnp.maximum(y + b2, 0.0)


if __name__ == "__main__":
    # FeedForward config: input_size=32, hidden=64, output_size=32, ReLU, dropout=0.
    D_IN, HIDDEN, D_OUT = 32, 64, 32
    B, S = 2, 8  # leading (batch, seq) dims; feedforward acts on last dim

    key = jax.random.PRNGKey(0)
    k_x, k_w1, k_b1, k_w2, k_b2, k_x2 = jax.random.split(key, 6)

    x = jax.random.normal(k_x, (B, S, D_IN), dtype=jnp.float32)
    # torch Linear weight is [out, in]; we store transposed [in, out] for x @ W.
    w1 = jax.random.normal(k_w1, (D_IN, HIDDEN), dtype=jnp.float32) * 0.1
    b1 = jax.random.normal(k_b1, (HIDDEN,), dtype=jnp.float32) * 0.1
    w2 = jax.random.normal(k_w2, (HIDDEN, D_OUT), dtype=jnp.float32) * 0.1
    b2 = jax.random.normal(k_b2, (D_OUT,), dtype=jnp.float32) * 0.1

    out = feedforward_projector(x, w1, b1, w2, b2)
    jax.block_until_ready(out)
    assert out.shape == (B, S, D_OUT)

    ref_mixed = _reference_mixed(x, w1, b1, w2, b2)
    ref_f32 = _reference_f32(x, w1, b1, w2, b2)
    assert jnp.allclose(out, ref_mixed, atol=1e-4, rtol=1e-4), \
        "mismatch vs mixed-precision reference"
    assert jnp.allclose(out, ref_f32, atol=8e-2, rtol=8e-2), \
        "mismatch vs f32 reference (sanity)"

    # Second case: non-divisible row count + multi-step grid exercises the
    # cdiv/padding path and the lane-dense folding with grid > 1.
    B2, S2 = 3, 37
    x_b = jax.random.normal(k_x2, (B2, S2, D_IN), dtype=jnp.float32)
    out_b = feedforward_projector(x_b, w1, b1, w2, b2, tile_m=16)
    jax.block_until_ready(out_b)
    assert out_b.shape == (B2, S2, D_OUT)
    assert jnp.allclose(out_b, _reference_mixed(x_b, w1, b1, w2, b2),
                        atol=1e-4, rtol=1e-4), "mismatch vs reference (case 2)"

    print("KERNEL_OK")
</pallas_src>

<mosaic_0001>
module attributes {stable_mosaic.version = 11 : i64} {
  func.func @_feedforward_kernel(%arg0: i32, %arg1: memref<8x128xf32, #tpu.memory_space<vmem>>, %arg2: memref<128x256xbf16, #tpu.memory_space<vmem>>, %arg3: memref<1x256xf32, #tpu.memory_space<vmem>>, %arg4: memref<256x128xbf16, #tpu.memory_space<vmem>>, %arg5: memref<1x128xf32, #tpu.memory_space<vmem>>, %arg6: memref<8x128xf32, #tpu.memory_space<vmem>>) attributes {dimension_semantics = [#tpu.dimension_semantics<parallel>], iteration_bounds = array<i64: 1>, scalar_prefetch = 0 : i64, scratch_operands = 0 : i64, tpu.core_type = #tpu.core_type<tc>, window_params = [{transform_indices = @transform_0, window_bounds = array<i64: 8, 128>}, {pipeline_mode = #tpu.pipeline_mode<synchronous>, transform_indices = @transform_1, window_bounds = array<i64: 128, 256>}, {pipeline_mode = #tpu.pipeline_mode<synchronous>, transform_indices = @transform_2, window_bounds = array<i64: 1, 256>}, {pipeline_mode = #tpu.pipeline_mode<synchronous>, transform_indices = @transform_3, window_bounds = array<i64: 256, 128>}, {pipeline_mode = #tpu.pipeline_mode<synchronous>, transform_indices = @transform_4, window_bounds = array<i64: 1, 128>}, {transform_indices = @transform_5, window_bounds = array<i64: 8, 128>}]} {
    %c0 = arith.constant 0 : index
    %c0_0 = arith.constant 0 : index
    %0 = vector.load %arg1[%c0, %c0_0] : memref<8x128xf32, #tpu.memory_space<vmem>>, vector<8x128xf32>
    %1 = arith.truncf %0 : vector<8x128xf32> to vector<8x128xbf16>
    %c0_1 = arith.constant 0 : index
    %c0_2 = arith.constant 0 : index
    %2 = vector.load %arg2[%c0_1, %c0_2] : memref<128x256xbf16, #tpu.memory_space<vmem>>, vector<128x256xbf16>
    %cst = arith.constant dense<0.000000e+00> : vector<8x256xf32>
    %3 = tpu.matmul %1, %2, %cst {dimension_numbers = #tpu.dot_dimension_numbers<[1], [0], [0], [1], [0, 0, 1, 1], [], []>} : vector<8x128xbf16>, vector<128x256xbf16>, vector<8x256xf32> -> vector<8x256xf32>
    %c0_3 = arith.constant 0 : index
    %c0_4 = arith.constant 0 : index
    %4 = vector.load %arg3[%c0_3, %c0_4] : memref<1x256xf32, #tpu.memory_space<vmem>>, vector<1x256xf32>
    %5 = vector.broadcast %4 : vector<1x256xf32> to vector<8x256xf32>
    %6 = arith.addf %3, %5 : vector<8x256xf32>
    %cst_5 = arith.constant 0.000000e+00 : f32
    %7 = vector.broadcast %cst_5 : f32 to vector<8x256xf32>
    %8 = arith.maximumf %6, %7 : vector<8x256xf32>
    %9 = arith.truncf %8 : vector<8x256xf32> to vector<8x256xbf16>
    %c0_6 = arith.constant 0 : index
    %c0_7 = arith.constant 0 : index
    %10 = vector.load %arg4[%c0_6, %c0_7] : memref<256x128xbf16, #tpu.memory_space<vmem>>, vector<256x128xbf16>
    %cst_8 = arith.constant dense<0.000000e+00> : vector<8x128xf32>
    %11 = tpu.matmul %9, %10, %cst_8 {dimension_numbers = #tpu.dot_dimension_numbers<[1], [0], [0], [1], [0, 0, 1, 1], [], []>} : vector<8x256xbf16>, vector<256x128xbf16>, vector<8x128xf32> -> vector<8x128xf32>
    %c0_9 = arith.constant 0 : index
    %c0_10 = arith.constant 0 : index
    %12 = vector.load %arg5[%c0_9, %c0_10] : memref<1x128xf32, #tpu.memory_space<vmem>>, vector<1x128xf32>
    %13 = vector.broadcast %12 : vector<1x128xf32> to vector<8x128xf32>
    %14 = arith.addf %11, %13 : vector<8x128xf32>
    %cst_11 = arith.constant 0.000000e+00 : f32
    %15 = vector.broadcast %cst_11 : f32 to vector<8x128xf32>
    %16 = arith.maximumf %14, %15 : vector<8x128xf32>
    %c0_12 = arith.constant 0 : index
    %c0_13 = arith.constant 0 : index
    %17 = vector.load %arg6[%c0_12, %c0_13] : memref<8x128xf32, #tpu.memory_space<vmem>>, vector<8x128xf32>
    tpu.vector_store %arg6[%c0_12, %c0_13], %16 {strides = array<i32>} : memref<8x128xf32, #tpu.memory_space<vmem>>, vector<8x128xf32>,
    return
  }
  func.func @transform_0(%arg0: i32) -> (i32, i32) {
    %c0_i32 = arith.constant 0 : i32
    %c0_i32_0 = arith.constant 0 : i32
    return %arg0, %c0_i32 : i32, i32
  }
  func.func @transform_1(%arg0: i32) -> (i32, i32) {
    %c0_i32 = arith.constant 0 : i32
    %c0_i32_0 = arith.constant 0 : i32
    %c0_i32_1 = arith.constant 0 : i32
    return %c0_i32, %c0_i32_0 : i32, i32
  }
  func.func @transform_2(%arg0: i32) -> (i32, i32) {
    %c0_i32 = arith.constant 0 : i32
    %c0_i32_0 = arith.constant 0 : i32
    %c0_i32_1 = arith.constant 0 : i32
    return %c0_i32, %c0_i32_0 : i32, i32
  }
  func.func @transform_3(%arg0: i32) -> (i32, i32) {
    %c0_i32 = arith.constant 0 : i32
    %c0_i32_0 = arith.constant 0 : i32
    %c0_i32_1 = arith.constant 0 : i32
    return %c0_i32, %c0_i32_0 : i32, i32
  }
  func.func @transform_4(%arg0: i32) -> (i32, i32) {
    %c0_i32 = arith.constant 0 : i32
    %c0_i32_0 = arith.constant 0 : i32
    %c0_i32_1 = arith.constant 0 : i32
    return %c0_i32, %c0_i32_0 : i32, i32
  }
  func.func @transform_5(%arg0: i32) -> (i32, i32) {
    %c0_i32 = arith.constant 0 : i32
    %c0_i32_0 = arith.constant 0 : i32
    return %arg0, %c0_i32 : i32, i32
  }
}

</mosaic_0001>

<llo_original>
// kernel: tile.13
$region0: #{tile.13}
  #allocation0 [shape = 's32[1]{0}', space=sflag, size = 0x4, scoped, tag = 'scoped memory for tile.13']
  %s0 = inlined_call_operand.vmem [shape: f32[64], index: 0, kind: input, shape index: {}]
  %s1 = inlined_call_operand.vmem [shape: f32[4,64], index: 1, kind: output, shape index: {}]
  // Predicated region
  $region2: #{tile.13} parent=0 // pred_check
    _
  $region3: #{tile.13} parent=0 // pred_check_branch
    %3 = sbr.rel (0) target = $region5
  $region4: #{tile.13} parent=0 // pred_region
    _
  $region5: #{tile.13} parent=0 // pred_fallthru
    _
  %v4 = vld [vmem:[%s0] ss:$0 sm:$0xff]
  %5 = vst [vmem:[%s1] sm:$0xf] %v4

// kernel: tile.14
$region0: #{tile.14}
  %s0 = inlined_call_operand.vmem [shape: f32[4,64], index: 0, kind: input, shape index: {}]
  %s1 = inlined_call_operand.vmem [shape: f32[1,256], index: 1, kind: output, shape index: {}]
  $region1: #{tile.14} parent=0
    #allocation0 [shape = 'u8[8192]{0}', space=vmem, size = 0x2000, scoped, tag = 'scoped mem for output reshape']
    #allocation1 [shape = 'u8[4096]{0}', space=vmem, size = 0x1000, scoped, tag = 'scoped mem for input reshape']
    %s3 = ssub.s32 16, 1
    %v4 = vld [vmem:[%s0] sm:%s3]
    %5 = vst [vmem:[#allocation1] sm:%s3] %v4
    %s6 = smov 3
    %v7 = vld [vmem:[#allocation1] ss:$2 sm:%s6]
    %vm8 = vcmask 523264
    %9 = vst.msk [vmem:[#allocation0] ss:$8 sm:$0x3] %vm8, %v7
    %s10 = scalar_lea.vmem [#allocation1], 1
    %s11 = smov 3
    %v12 = vld [vmem:[%s10] ss:$2 sm:%s11]
    %13 = vrot.lane.b32.xlu0 %v12, 64
    %v14 = vpop.permute.xlu0 %13
    %vm15 = vcmask 1048064
    %16 = vst.msk [vmem:[#allocation0] ss:$8 sm:$0x3] %vm15, %v14
    %s18 = ssub.s32 2, 1
    %v19 = vld [vmem:[#allocation0] sm:%s18]
    %s21 = ssub.s32 2, 1
    %22 = vst [vmem:[%s1] sm:%s21] %v19
    %s23 = scalar_lea.vmem [#allocation0], 8
    %v24 = vld [vmem:[%s23] sm:%s18]
    %s26 = ssub.s32 2, 1
    %s27 = scalar_lea.vmem %s1, 1
    %28 = vst [vmem:[%s27] sm:%s26] %v24

// kernel: tile.18
$region0: #{tile.18}
  #allocation0 [shape = 's32[1]{0}', space=sflag, size = 0x4, scoped, tag = 'scoped memory for tile.18']
  %s0 = inlined_call_operand.vmem [shape: f32[32], index: 0, kind: input, shape index: {}]
  %s1 = inlined_call_operand.vmem [shape: f32[4,32], index: 1, kind: output, shape index: {}]
  // Predicated region
  $region2: #{tile.18} parent=0 // pred_check
    _
  $region3: #{tile.18} parent=0 // pred_check_branch
    %3 = sbr.rel (0) target = $region5
  $region4: #{tile.18} parent=0 // pred_region
    _
  $region5: #{tile.18} parent=0 // pred_fallthru
    _
  %v4 = vld [vmem:[%s0] ss:$0 sm:$0xff]
  %5 = vst [vmem:[%s1] sm:$0xf] %v4

// kernel: tile.19
$region0: #{tile.19}
  %s0 = inlined_call_operand.vmem [shape: f32[4,32], index: 0, kind: input, shape index: {}]
  %s1 = inlined_call_operand.vmem [shape: f32[1,128], index: 1, kind: output, shape index: {}]
  $region1: #{tile.19} parent=0
    #allocation0 [shape = 'u8[4096]{0}', space=vmem, size = 0x1000, scoped, tag = 'scoped mem for output reshape']
    #allocation1 [shape = 'u8[4096]{0}', space=vmem, size = 0x1000, scoped, tag = 'scoped mem for input reshape']
    %s3 = ssub.s32 16, 1
    %v4 = vld [vmem:[%s0] sm:%s3]
    %5 = vst [vmem:[#allocation1] sm:%s3] %v4
    %v6 = vld [vmem:[#allocation1] sm:$0x1]
    %vm7 = vcmask 261120
    %8 = vst.msk [vmem:[#allocation0] sm:$0x1] %vm7, %v6
    %s9 = scalar_lea.vmem [#allocation1], 3
    %v10 = vld [vmem:[%s9] sm:$0x1]
    %11 = vrot.lane.b32.xlu0 %v10, 96
    %v12 = vpop.permute.xlu0 %11
    %vm13 = vcmask 1048320
    %14 = vst.msk [vmem:[#allocation0] sm:$0x1] %vm13, %v12
    %s15 = scalar_lea.vmem [#allocation1], 2
    %v16 = vld [vmem:[%s15] sm:$0x1]
    %17 = vrot.lane.b32.xlu0 %v16, 64
    %v18 = vpop.permute.xlu0 %17
    %vm19 = vcmask 785920
    %20 = vst.msk [vmem:[#allocation0] sm:$0x1] %vm19, %v18
    %s21 = scalar_lea.vmem [#allocation1], 1
    %v22 = vld [vmem:[%s21] sm:$0x1]
    %23 = vrot.lane.b32.xlu0 %v22, 32
    %v24 = vpop.permute.xlu0 %23
    %vm25 = vcmask 523520
    %26 = vst.msk [vmem:[#allocation0] sm:$0x1] %vm25, %v24
    %s28 = ssub.s32 2, 1
    %v29 = vld [vmem:[#allocation0] sm:%s28]
    %s31 = ssub.s32 2, 1
    %32 = vst [vmem:[%s1] sm:%s31] %v29

// kernel: feedforward_projector.1
$region0: #{feedforward_projector.1}
  #allocation0 [shape = 'u32[]', space=smem, size = 0x4, offset = 0x4, fixed_abs, tag = 'smem constant byte address 0x4 - core index']
  #allocation1 [shape = 'u32[72,128]{1,0:T(1,128)}', space=vmem, size = 0x9000, scoped, tag = 'internal scratch']
  %s0 = inlined_call_operand.vmem [shape: f32[8,128], index: 0, kind: input, shape index: {}]
  %s1 = inlined_call_operand.vmem [shape: bf16[128,256], index: 1, kind: input, shape index: {}]
  %s2 = inlined_call_operand.vmem [shape: f32[1,256], index: 2, kind: input, shape index: {}]
  %s3 = inlined_call_operand.vmem [shape: bf16[256,128], index: 3, kind: input, shape index: {}]
  %s4 = inlined_call_operand.vmem [shape: f32[1,128], index: 4, kind: input, shape index: {}]
  %s5 = inlined_call_operand.vmem [shape: f32[8,128], index: 5, kind: output, shape index: {}]
  %s6 = sld [smem:[#allocation0]]
  $region30: #{feedforward_projector.1} parent=0
    _
  %s8 = ssub.s32 1, %s6
  %s9 = scalar_select 0, %s8, %s6
  // Predicated region
  $region2: #{feedforward_projector.1} parent=0 // pred_check
    _
  $region3: #{feedforward_projector.1} parent=0 // pred_check_branch
    %11 = sbr.rel (0) target = $region5
  $region4: #{feedforward_projector.1} parent=0 // pred_region
    _
  $region5: #{feedforward_projector.1} parent=0 // pred_fallthru
    _
  // Predicated region
  $region6: #{feedforward_projector.1} parent=0 // pred_check
    _
  $region7: #{feedforward_projector.1} parent=0 // pred_check_branch
    %13 = sbr.rel (0) target = $region9
  $region8: #{feedforward_projector.1} parent=0 // pred_region
    _
  $region9: #{feedforward_projector.1} parent=0 // pred_fallthru
    _
  // Predicated region
  $region10: #{feedforward_projector.1} parent=0 // pred_check
    _
  $region11: #{feedforward_projector.1} parent=0 // pred_check_branch
    %15 = sbr.rel (0) target = $region13
  $region12: #{feedforward_projector.1} parent=0 // pred_region
    _
  $region13: #{feedforward_projector.1} parent=0 // pred_fallthru
    _
  // Predicated region
  $region14: #{feedforward_projector.1} parent=0 // pred_check
    _
  $region15: #{feedforward_projector.1} parent=0 // pred_check_branch
    %17 = sbr.rel (0) target = $region17
  $region16: #{feedforward_projector.1} parent=0 // pred_region
    _
  $region17: #{feedforward_projector.1} parent=0 // pred_fallthru
    _
  // Predicated region
  $region18: #{feedforward_projector.1} parent=0 // pred_check
    _
  $region19: #{feedforward_projector.1} parent=0 // pred_check_branch
    %19 = sbr.rel (0) target = $region21
  $region20: #{feedforward_projector.1} parent=0 // pred_region
    _
  $region21: #{feedforward_projector.1} parent=0 // pred_fallthru
    _
  %v20 = vld [vmem:[%s0] sm:$0xff]
  %v21 = vpack.c.bf16 %v20, %v20
  %v22 = vld [vmem:[%s1] sm:$0xff]
  %v23 = vld [vmem:[%s1 + $0x8] sm:$0xff]
  %v24 = vld [vmem:[%s1 + $0x10] sm:$0xff]
  %v25 = vld [vmem:[%s1 + $0x18] sm:$0xff]
  %v26 = vld [vmem:[%s1 + $0x20] sm:$0xff]
  %v27 = vld [vmem:[%s1 + $0x28] sm:$0xff]
  %v28 = vld [vmem:[%s1 + $0x30] sm:$0xff]
  %v29 = vld [vmem:[%s1 + $0x38] sm:$0xff]
  %v30 = vld [vmem:[%s1 + $0x40] sm:$0xff]
  %v31 = vld [vmem:[%s1 + $0x48] sm:$0xff]
  %v32 = vld [vmem:[%s1 + $0x50] sm:$0xff]
  %v33 = vld [vmem:[%s1 + $0x58] sm:$0xff]
  %v34 = vld [vmem:[%s1 + $0x60] sm:$0xff]
  %v35 = vld [vmem:[%s1 + $0x68] sm:$0xff]
  %v36 = vld [vmem:[%s1 + $0x70] sm:$0xff]
  %v37 = vld [vmem:[%s1 + $0x78] sm:$0xff]
  %v38 = vld [vmem:[%s2] sm:$0x3]
  %v40 = vperm.slane %v38, 0
  %v41 = vperm.slane %v38, 1
  %v60 = vunpack.c.l.b16 %v22
  %v61 = vunpack.c.h.b16 %v22
  %v62 = vunpack.c.l.b16 %v23
  %v63 = vunpack.c.h.b16 %v23
  %v64 = vunpack.c.l.b16 %v24
  %v65 = vunpack.c.h.b16 %v24
  %v66 = vunpack.c.l.b16 %v25
  %v67 = vunpack.c.h.b16 %v25
  %v68 = vunpack.c.l.b16 %v26
  %v69 = vunpack.c.h.b16 %v26
  %v70 = vunpack.c.l.b16 %v27
  %v71 = vunpack.c.h.b16 %v27
  %v72 = vunpack.c.l.b16 %v28
  %v73 = vunpack.c.h.b16 %v28
  %v74 = vunpack.c.l.b16 %v29
  %v75 = vunpack.c.h.b16 %v29
  %v76 = vunpack.c.l.b16 %v30
  %v77 = vunpack.c.h.b16 %v30
  %v78 = vunpack.c.l.b16 %v31
  %v79 = vunpack.c.h.b16 %v31
  %v80 = vunpack.c.l.b16 %v32
  %v81 = vunpack.c.h.b16 %v32
  %v82 = vunpack.c.l.b16 %v33
  %v83 = vunpack.c.h.b16 %v33
  %v84 = vunpack.c.l.b16 %v34
  %v85 = vunpack.c.h.b16 %v34
  %v86 = vunpack.c.l.b16 %v35
  %v87 = vunpack.c.h.b16 %v35
  %v88 = vunpack.c.l.b16 %v36
  %v89 = vunpack.c.h.b16 %v36
  %v90 = vunpack.c.l.b16 %v37
  %v91 = vunpack.c.h.b16 %v37
  %v92 = vpack.c.b16 %v62, %v60
  %v93 = vpack.c.b16 %v63, %v61
  %v94 = vpack.c.b16 %v66, %v64
  %v95 = vpack.c.b16 %v67, %v65
  %v96 = vpack.c.b16 %v70, %v68
  %v97 = vpack.c.b16 %v71, %v69
  %v98 = vpack.c.b16 %v74, %v72
  %v99 = vpack.c.b16 %v75, %v73
  %v100 = vpack.c.b16 %v78, %v76
  %v101 = vpack.c.b16 %v79, %v77
  %v102 = vpack.c.b16 %v82, %v80
  %v103 = vpack.c.b16 %v83, %v81
  %v104 = vpack.c.b16 %v86, %v84
  %v105 = vpack.c.b16 %v87, %v85
  %v106 = vpack.c.b16 %v90, %v88
  %v107 = vpack.c.b16 %v91, %v89
  %124 = vmatpush.bf16.msra.mxu0 %v106
  %125 = vmatpush.bf16.msra.mxu0 %v104
  %126 = vmatpush.bf16.msra.mxu0 %v102
  %127 = vmatpush.bf16.msra.mxu0 %v100
  %128 = vmatpush.bf16.msra.mxu0 %v98
  %129 = vmatpush.bf16.msra.mxu0 %v96
  %130 = vmatpush.bf16.msra.mxu0 %v94
  %131 = vmatpush.bf16.msra.mxu0 %v92
  %132 = vmatmul.bf16.gmra.mxu0 %v21
  %v133 = vpop.f32.mrf.mxu0
  %v134 = vadd.f32 %v40, %v133
  %v135 = vpop.f32.mrf.mxu0
  %136 = vdwg.mxu0
  %137 = vmatpush.bf16.msra.mxu0 %v107
  %138 = vmatpush.bf16.msra.mxu0 %v105
  %139 = vmatpush.bf16.msra.mxu0 %v103
  %140 = vmatpush.bf16.msra.mxu0 %v101
  %141 = vmatpush.bf16.msra.mxu0 %v99
  %142 = vmatpush.bf16.msra.mxu0 %v97
  %143 = vmatpush.bf16.msra.mxu0 %v95
  %144 = vmatpush.bf16.msra.mxu0 %v93
  %145 = vmatmul.bf16.gmra.mxu0 %v21
  %v146 = vpop.f32.mrf.mxu0
  %v147 = vadd.f32 %v41, %v146
  %v148 = vpop.f32.mrf.mxu0
  %149 = vdwg.mxu0
  %v150 = vmax.f32 %v134, 0.0
  %v151 = vmax.f32 %v147, 0.0
  %v152 = vpack.c.bf16 %v150, %v150
  %v153 = vpack.c.bf16 %v151, %v151
  %v154 = vld [vmem:[%s3] sm:$0xf]
  %v155 = vld [vmem:[%s3 + $0x4] sm:$0xf]
  %v156 = vld [vmem:[%s3 + $0x8] sm:$0xf]
  %v157 = vld [vmem:[%s3 + $0xc] sm:$0xf]
  %v158 = vld [vmem:[%s3 + $0x10] sm:$0xf]
  %v159 = vld [vmem:[%s3 + $0x14] sm:$0xf]
  %v160 = vld [vmem:[%s3 + $0x18] sm:$0xf]
  %v161 = vld [vmem:[%s3 + $0x1c] sm:$0xf]
  %v162 = vld [vmem:[%s3 + $0x20] sm:$0xf]
  %v163 = vld [vmem:[%s3 + $0x24] sm:$0xf]
  %v164 = vld [vmem:[%s3 + $0x28] sm:$0xf]
  %v165 = vld [vmem:[%s3 + $0x2c] sm:$0xf]
  %v166 = vld [vmem:[%s3 + $0x30] sm:$0xf]
  %v167 = vld [vmem:[%s3 + $0x34] sm:$0xf]
  %v168 = vld [vmem:[%s3 + $0x38] sm:$0xf]
  %v169 = vld [vmem:[%s3 + $0x3c] sm:$0xf]
  %v170 = vld [vmem:[%s3 + $0x40] sm:$0xf]
  %v171 = vld [vmem:[%s3 + $0x44] sm:$0xf]
  %v172 = vld [vmem:[%s3 + $0x48] sm:$0xf]
  %v173 = vld [vmem:[%s3 + $0x4c] sm:$0xf]
  %v174 = vld [vmem:[%s3 + $0x50] sm:$0xf]
  %v175 = vld [vmem:[%s3 + $0x54] sm:$0xf]
  %v176 = vld [vmem:[%s3 + $0x58] sm:$0xf]
  %v177 = vld [vmem:[%s3 + $0x5c] sm:$0xf]
  %v178 = vld [vmem:[%s3 + $0x60] sm:$0xf]
  %v179 = vld [vmem:[%s3 + $0x64] sm:$0xf]
  %v180 = vld [vmem:[%s3 + $0x68] sm:$0xf]
  %v181 = vld [vmem:[%s3 + $0x6c] sm:$0xf]
  %v182 = vld [vmem:[%s3 + $0x70] sm:$0xf]
  %v183 = vld [vmem:[%s3 + $0x74] sm:$0xf]
  %v184 = vld [vmem:[%s3 + $0x78] sm:$0xf]
  %v185 = vld [vmem:[%s3 + $0x7c] sm:$0xf]
  %v186 = vld [vmem:[%s4] sm:$0x1]
  %v188 = vperm.slane %v186, 0
  %v222 = vunpack.c.l.b16 %v154
  %v223 = vunpack.c.l.b16 %v155
  %v224 = vunpack.c.l.b16 %v156
  %v225 = vunpack.c.l.b16 %v157
  %v226 = vunpack.c.l.b16 %v158
  %v227 = vunpack.c.l.b16 %v159
  %v228 = vunpack.c.l.b16 %v160
  %v229 = vunpack.c.l.b16 %v161
  %v230 = vunpack.c.l.b16 %v162
  %v231 = vunpack.c.l.b16 %v163
  %v232 = vunpack.c.l.b16 %v164
  %v233 = vunpack.c.l.b16 %v165
  %v234 = vunpack.c.l.b16 %v166
  %v235 = vunpack.c.l.b16 %v167
  %v236 = vunpack.c.l.b16 %v168
  %v237 = vunpack.c.l.b16 %v169
  %v238 = vunpack.c.l.b16 %v170
  %v239 = vunpack.c.l.b16 %v171
  %v240 = vunpack.c.l.b16 %v172
  %v241 = vunpack.c.l.b16 %v173
  %v242 = vunpack.c.l.b16 %v174
  %v243 = vunpack.c.l.b16 %v175
  %v244 = vunpack.c.l.b16 %v176
  %v245 = vunpack.c.l.b16 %v177
  %v246 = vunpack.c.l.b16 %v178
  %v247 = vunpack.c.l.b16 %v179
  %v248 = vunpack.c.l.b16 %v180
  %v249 = vunpack.c.l.b16 %v181
  %v250 = vunpack.c.l.b16 %v182
  %v251 = vunpack.c.l.b16 %v183
  %v252 = vunpack.c.l.b16 %v184
  %v253 = vunpack.c.l.b16 %v185
  %v254 = vpack.c.b16 %v223, %v222
  %v255 = vpack.c.b16 %v225, %v224
  %v256 = vpack.c.b16 %v227, %v226
  %v257 = vpack.c.b16 %v229, %v228
  %v258 = vpack.c.b16 %v231, %v230
  %v259 = vpack.c.b16 %v233, %v232
  %v260 = vpack.c.b16 %v235, %v234
  %v261 = vpack.c.b16 %v237, %v236
  %v262 = vpack.c.b16 %v239, %v238
  %v263 = vpack.c.b16 %v241, %v240
  %v264 = vpack.c.b16 %v243, %v242
  %v265 = vpack.c.b16 %v245, %v244
  %v266 = vpack.c.b16 %v247, %v246
  %v267 = vpack.c.b16 %v249, %v248
  %v268 = vpack.c.b16 %v251, %v250
  %v269 = vpack.c.b16 %v253, %v252
  %286 = vmatpush.bf16.msra.mxu0 %v261
  %287 = vmatpush.bf16.msra.mxu0 %v260
  %288 = vmatpush.bf16.msra.mxu0 %v259
  %289 = vmatpush.bf16.msra.mxu0 %v258
  %290 = vmatpush.bf16.msra.mxu0 %v257
  %291 = vmatpush.bf16.msra.mxu0 %v256
  %292 = vmatpush.bf16.msra.mxu0 %v255
  %293 = vmatpush.bf16.msra.mxu0 %v254
  %294 = vmatmul.bf16.gmra.mxu0 %v152
  %v295 = vpop.f32.mrf.mxu0
  %v296 = vadd.f32 %v188, %v295
  %v297 = vpop.f32.mrf.mxu0
  %298 = vdwg.mxu0
  %299 = vmatpush.bf16.msra.mxu0 %v269
  %300 = vmatpush.bf16.msra.mxu0 %v268
  %301 = vmatpush.bf16.msra.mxu0 %v267
  %302 = vmatpush.bf16.msra.mxu0 %v266
  %303 = vmatpush.bf16.msra.mxu0 %v265
  %304 = vmatpush.bf16.msra.mxu0 %v264
  %305 = vmatpush.bf16.msra.mxu0 %v263
  %306 = vmatpush.bf16.msra.mxu0 %v262
  %307 = vmatmul.bf16.gmra.mxu0 %v153
  %v308 = vpop.f32.mrf.mxu0
  %v309 = vadd.f32 %v296, %v308
  %v310 = vpop.f32.mrf.mxu0
  %311 = vdwg.mxu0
  %v312 = vmax.f32 %v309, 0.0
  %313 = vst [vmem:[%s5] sm:$0xff] %v312
  // Predicated region
  $region22: #{feedforward_projector.1} parent=0 // pred_check
    _
  $region23: #{feedforward_projector.1} parent=0 // pred_check_branch
    %315 = sbr.rel (0) target = $region25
  $region24: #{feedforward_projector.1} parent=0 // pred_region
    _
  $region25: #{feedforward_projector.1} parent=0 // pred_fallthru
    _
  // Predicated region
  $region26: #{feedforward_projector.1} parent=0 // pred_check
    _
  $region27: #{feedforward_projector.1} parent=0 // pred_check_branch
    %317 = sbr.rel (0) target = $region29
  $region28: #{feedforward_projector.1} parent=0 // pred_region
    _
  $region29: #{feedforward_projector.1} parent=0 // pred_fallthru
    _

</llo_original>
